<compile_context>
chip_gen: v7x
topology: tpu7x:2x2x1
jax: 0.10.0
libtpu: 0.0.40
codegen_flags: <defaults>
</compile_context>

<pallas_src>
import jax
import jax.numpy as jnp
from jax.experimental import pallas as pl
from jax.experimental.pallas import tpu as pltpu


def mlp_actor_kernel(xt_ref, w1t_ref, b1_ref, w2_ref, b2_ref, noise_ref, out_ref):
    # xt_ref : (D, TILE_B)  input tile, batch on lanes
    # w1t_ref: (H, D)       first layer weights, transposed, VMEM-resident
    # b1_ref : (H, 1)       first layer bias column
    # w2_ref : (H, 1)       second layer weight column
    # b2_ref : (1, 1)       second layer bias, SMEM scalar
    # noise_ref/out_ref: (1, TILE_B) lane-dense rows
    #
    # Layer 1 (MXU): h^T = W1^T @ x^T, then bias + ReLU on the VPU.
    h = jnp.dot(w1t_ref[...], xt_ref[...], preferred_element_type=jnp.float32)
    h = jnp.maximum(h + b1_ref[...], 0.0)                     # (H, TILE_B)

    # Layer 2 (N=1): VPU multiply + sublane (XLU) reduce instead of an MXU
    # matmul with a single output column.
    mu = jnp.sum(h * w2_ref[...], axis=0, keepdims=True)      # (1, TILE_B)
    mu = mu + b2_ref[0, 0]

    # actions = mu + exp(log_std)*eps + noise_scale*noise  (noise pre-fused)
    actions = mu + noise_ref[...]

    # sigmoid(clamp(actions, -1.5, 10))
    actions = jnp.clip(actions, -1.5, 10.0)
    out_ref[...] = jax.nn.sigmoid(actions)


def mlp_actor_forward(x, w1, b1, w2, b2, log_std, eps, noise,
                      *, noise_scale=0.1, tile_b=128):
    """x:(B,D) w1:(D,H) b1:(1,H) w2:(H,1) b2:(1,1) log_std:(1,1) eps/noise:(B,1)."""
    B, D = x.shape
    H = w1.shape[1]
    assert w2.shape == (H, 1), "kernel is specialized for act_dim == 1"

    # Fuse the two gaussian streams into one lane-dense (1, B) stream:
    #   exp(log_std) * eps + noise_scale * noise
    std = jnp.exp(log_std.astype(jnp.float32))                 # (1, 1)
    total_noise = (eps * std + noise_scale * noise).reshape(1, B)

    # Pad the batch up to a multiple of the tile and lay everything out
    # transposed so batch sits on the lane axis (lane-dense IO).
    num_tiles = pl.cdiv(B, tile_b)
    Bp = num_tiles * tile_b
    if Bp != B:
        x = jnp.pad(x, ((0, Bp - B), (0, 0)))
        total_noise = jnp.pad(total_noise, ((0, 0), (0, Bp - B)))

    xt = x.astype(jnp.float32).T                               # (D, Bp)
    w1t = w1.astype(jnp.float32).T                             # (H, D)
    b1c = b1.astype(jnp.float32).reshape(H, 1)                 # (H, 1)
    w2c = w2.astype(jnp.float32).reshape(H, 1)                 # (H, 1)
    b2s = b2.astype(jnp.float32).reshape(1, 1)                 # (1, 1) -> SMEM

    out = pl.pallas_call(
        mlp_actor_kernel,
        out_shape=jax.ShapeDtypeStruct((1, Bp), jnp.float32),
        grid=(num_tiles,),
        in_specs=[
            pl.BlockSpec((D, tile_b), lambda i: (0, i)),                 # x^T tile
            pl.BlockSpec((H, D), lambda i: (0, 0)),                      # W1^T (resident)
            pl.BlockSpec((H, 1), lambda i: (0, 0)),                      # b1 (resident)
            pl.BlockSpec((H, 1), lambda i: (0, 0)),                      # w2 (resident)
            pl.BlockSpec(memory_space=pltpu.MemorySpace.SMEM),           # b2 scalar
            pl.BlockSpec((1, tile_b), lambda i: (0, i)),                 # fused noise
        ],
        out_specs=pl.BlockSpec((1, tile_b), lambda i: (0, i)),
        compiler_params=pltpu.CompilerParams(
            # Parallel batch axis: shards grid steps across v7x's 2 TCs.
            dimension_semantics=("parallel",),
        ),
    )(xt, w1t, b1c, w2c, b2s, total_noise)

    return out.reshape(Bp, 1)[:B]                              # back to (B, act_dim)


if __name__ == "__main__":
    batch = 512          # multiple tiles -> exercises the pipelined grid
    input_dim = 32
    hidden_dim = 32
    act_dim = 1
    tile_b = 128

    key = jax.random.PRNGKey(0)
    k_x, k_w1, k_b1, k_w2, k_b2, k_eps, k_noise = jax.random.split(key, 7)

    # Deterministic parameter init (shapes match MLPActor's nn.Linear layers,
    # stored as (in_features, out_features) so the math is x @ W + b).
    x = jax.random.normal(k_x, (batch, input_dim), dtype=jnp.float32)
    w1 = jax.random.normal(k_w1, (input_dim, hidden_dim), dtype=jnp.float32) * 0.1
    b1 = jax.random.normal(k_b1, (1, hidden_dim), dtype=jnp.float32) * 0.01
    w2 = jax.random.normal(k_w2, (hidden_dim, act_dim), dtype=jnp.float32) * 0.1
    b2 = jax.random.normal(k_b2, (1, act_dim), dtype=jnp.float32) * 0.01
    log_std = jnp.full((1, act_dim), -0.5, dtype=jnp.float32)   # nn.Parameter(-0.5*ones)

    # Standard-normal draws standing in for dist.sample() and torch.normal(0, 0.1).
    eps = jax.random.normal(k_eps, (batch, act_dim), dtype=jnp.float32)
    noise = jax.random.normal(k_noise, (batch, act_dim), dtype=jnp.float32)

    actions = mlp_actor_forward(x, w1, b1, w2, b2, log_std, eps, noise,
                                noise_scale=0.1, tile_b=tile_b)
    jax.block_until_ready(actions)

    # Pure-JAX reference of the same forward pass.
    h_ref = jnp.maximum(x @ w1 + b1, 0.0)
    mu_ref = h_ref @ w2 + b2
    a_ref = mu_ref + jnp.exp(log_std) * eps + 0.1 * noise
    ref = jax.nn.sigmoid(jnp.clip(a_ref, -1.5, 10.0))
    assert actions.shape == (batch, act_dim)
    assert jnp.allclose(actions, ref, atol=1e-5), "mismatch vs JAX reference"

    print("KERNEL_OK")
</pallas_src>

<mosaic_0001>
module attributes {stable_mosaic.version = 11 : i64} {
  func.func @mlp_actor_kernel(%arg0: i32, %arg1: memref<32x128xf32, #tpu.memory_space<vmem>>, %arg2: memref<32x32xf32, #tpu.memory_space<vmem>>, %arg3: memref<32x1xf32, #tpu.memory_space<vmem>>, %arg4: memref<32x1xf32, #tpu.memory_space<vmem>>, %arg5: memref<1x1xf32, #tpu.memory_space<smem>>, %arg6: memref<1x128xf32, #tpu.memory_space<vmem>>, %arg7: memref<1x128xf32, #tpu.memory_space<vmem>>) attributes {dimension_semantics = [#tpu.dimension_semantics<parallel>], iteration_bounds = array<i64: 4>, scalar_prefetch = 0 : i64, scratch_operands = 0 : i64, tpu.core_type = #tpu.core_type<tc>, window_params = [{transform_indices = @transform_0, window_bounds = array<i64: 32, 128>}, {pipeline_mode = #tpu.pipeline_mode<synchronous>, transform_indices = @transform_1, window_bounds = array<i64: 32, 32>}, {pipeline_mode = #tpu.pipeline_mode<synchronous>, transform_indices = @transform_2, window_bounds = array<i64: 32, 1>}, {pipeline_mode = #tpu.pipeline_mode<synchronous>, transform_indices = @transform_3, window_bounds = array<i64: 32, 1>}, {transform_indices = @transform_4, window_bounds = array<i64: 1, 1>}, {transform_indices = @transform_5, window_bounds = array<i64: 1, 128>}, {transform_indices = @transform_6, window_bounds = array<i64: 1, 128>}]} {
    %c0 = arith.constant 0 : index
    %c0_0 = arith.constant 0 : index
    %0 = vector.load %arg2[%c0, %c0_0] : memref<32x32xf32, #tpu.memory_space<vmem>>, vector<32x32xf32>
    %c0_1 = arith.constant 0 : index
    %c0_2 = arith.constant 0 : index
    %1 = vector.load %arg1[%c0_1, %c0_2] : memref<32x128xf32, #tpu.memory_space<vmem>>, vector<32x128xf32>
    %cst = arith.constant dense<0.000000e+00> : vector<32x128xf32>
    %2 = tpu.matmul %0, %1, %cst {dimension_numbers = #tpu.dot_dimension_numbers<[1], [0], [0], [1], [0, 0, 1, 1], [], []>} : vector<32x32xf32>, vector<32x128xf32>, vector<32x128xf32> -> vector<32x128xf32>
    %c0_3 = arith.constant 0 : index
    %c0_4 = arith.constant 0 : index
    %3 = vector.load %arg3[%c0_3, %c0_4] : memref<32x1xf32, #tpu.memory_space<vmem>>, vector<32x1xf32>
    %4 = vector.broadcast %3 : vector<32x1xf32> to vector<32x128xf32>
    %5 = arith.addf %2, %4 : vector<32x128xf32>
    %cst_5 = arith.constant 0.000000e+00 : f32
    %6 = vector.broadcast %cst_5 : f32 to vector<32x128xf32>
    %7 = arith.maximumf %5, %6 : vector<32x128xf32>
    %c0_6 = arith.constant 0 : index
    %c0_7 = arith.constant 0 : index
    %8 = vector.load %arg4[%c0_6, %c0_7] : memref<32x1xf32, #tpu.memory_space<vmem>>, vector<32x1xf32>
    %9 = vector.broadcast %8 : vector<32x1xf32> to vector<32x128xf32>
    %10 = arith.mulf %7, %9 : vector<32x128xf32>
    %cst_8 = arith.constant dense<0.000000e+00> : vector<128xf32>
    %11 = vector.multi_reduction <add>, %10, %cst_8 [0] : vector<32x128xf32> to vector<128xf32>
    %12 = vector.shape_cast %11 : vector<128xf32> to vector<1x128xf32>
    %c0_9 = arith.constant 0 : index
    %c0_10 = arith.constant 0 : index
    %13 = memref.load %arg5[%c0_9, %c0_10] : memref<1x1xf32, #tpu.memory_space<smem>>
    %14 = vector.broadcast %13 : f32 to vector<1x128xf32>
    %15 = arith.addf %12, %14 : vector<1x128xf32>
    %c0_11 = arith.constant 0 : index
    %c0_12 = arith.constant 0 : index
    %16 = vector.load %arg6[%c0_11, %c0_12] : memref<1x128xf32, #tpu.memory_space<vmem>>, vector<1x128xf32>
    %17 = arith.addf %15, %16 : vector<1x128xf32>
    %cst_13 = arith.constant -1.500000e+00 : f32
    %cst_14 = arith.constant 1.000000e+01 : f32
    %18 = vector.broadcast %cst_13 : f32 to vector<1x128xf32>
    %19 = arith.maximumf %18, %17 : vector<1x128xf32>
    %20 = vector.broadcast %cst_14 : f32 to vector<1x128xf32>
    %21 = arith.minimumf %20, %19 : vector<1x128xf32>
    %22 = arith.negf %21 : vector<1x128xf32>
    %23 = math.exp %22 : vector<1x128xf32>
    %cst_15 = arith.constant 1.000000e+00 : f32
    %24 = vector.broadcast %cst_15 : f32 to vector<1x128xf32>
    %25 = arith.addf %24, %23 : vector<1x128xf32>
    %26 = arith.divf %24, %25 : vector<1x128xf32>
    %c0_16 = arith.constant 0 : index
    %c0_17 = arith.constant 0 : index
    %27 = vector.load %arg7[%c0_16, %c0_17] : memref<1x128xf32, #tpu.memory_space<vmem>>, vector<1x128xf32>
    tpu.vector_store %arg7[%c0_16, %c0_17], %26 {strides = array<i32>} : memref<1x128xf32, #tpu.memory_space<vmem>>, vector<1x128xf32>,
    return
  }
  func.func @transform_0(%arg0: i32) -> (i32, i32) {
    %c0_i32 = arith.constant 0 : i32
    %c0_i32_0 = arith.constant 0 : i32
    return %c0_i32, %arg0 : i32, i32
  }
  func.func @transform_1(%arg0: i32) -> (i32, i32) {
    %c0_i32 = arith.constant 0 : i32
    %c0_i32_0 = arith.constant 0 : i32
    %c0_i32_1 = arith.constant 0 : i32
    return %c0_i32, %c0_i32_0 : i32, i32
  }
  func.func @transform_2(%arg0: i32) -> (i32, i32) {
    %c0_i32 = arith.constant 0 : i32
    %c0_i32_0 = arith.constant 0 : i32
    %c0_i32_1 = arith.constant 0 : i32
    return %c0_i32, %c0_i32_0 : i32, i32
  }
  func.func @transform_3(%arg0: i32) -> (i32, i32) {
    %c0_i32 = arith.constant 0 : i32
    %c0_i32_0 = arith.constant 0 : i32
    %c0_i32_1 = arith.constant 0 : i32
    return %c0_i32, %c0_i32_0 : i32, i32
  }
  func.func @transform_4(%arg0: i32) -> (i32, i32) {
    %c0_i32 = arith.constant 0 : i32
    %c0_i32_0 = arith.constant 0 : i32
    %c0_i32_1 = arith.constant 0 : i32
    return %c0_i32, %c0_i32_0 : i32, i32
  }
  func.func @transform_5(%arg0: i32) -> (i32, i32) {
    %c0_i32 = arith.constant 0 : i32
    %c0_i32_0 = arith.constant 0 : i32
    return %c0_i32, %arg0 : i32, i32
  }
  func.func @transform_6(%arg0: i32) -> (i32, i32) {
    %c0_i32 = arith.constant 0 : i32
    %c0_i32_0 = arith.constant 0 : i32
    return %c0_i32, %arg0 : i32, i32
  }
}

</mosaic_0001>

<llo_original>
// kernel: tpu_custom_call.1
$region0: #{tpu_custom_call.1}
  #allocation0 [shape = 'u32[]', space=smem, size = 0x4, offset = 0x4, fixed_abs, tag = 'smem constant byte address 0x4 - core index']
  #allocation1 [shape = 'u32[144,128]{1,0:T(1,128)}', space=vmem, size = 0x12000, scoped, tag = 'internal scratch']
  #allocation2 [shape = 'f32[1,1]{1,0:T(1,128)S(6)}', space=smem, size = 0x200, scoped, tag = 'scoped memory for tpu_custom_call.1']
  %s0 = inlined_call_operand.hbm [shape: f32[32,512], index: 0, kind: input, shape index: {}]
  %s1 = inlined_call_operand.vmem [shape: f32[32,32], index: 1, kind: input, shape index: {}]
  %s2 = inlined_call_operand.vmem [shape: f32[32,1], index: 2, kind: input, shape index: {}]
  %s3 = inlined_call_operand.vmem [shape: f32[32,1], index: 3, kind: input, shape index: {}]
  %s4 = inlined_call_operand.<no memory space> [shape: f32[1,1], index: 4, kind: input, shape index: {}]
  %s5 = inlined_call_operand.vmem [shape: f32[1,512], index: 5, kind: input, shape index: {}]
  %s6 = inlined_call_operand.hbm [shape: f32[1,512], index: 6, kind: output, shape index: {}]
  %s7 = sld [smem:[#allocation0]]
  $region61: #{tpu_custom_call.1} parent=0
    _
  %s9 = ssub.s32 1, %s7
  %s10 = scalar_select 0, %s9, %s7
  %11 = sst [smem:[#allocation2]] %s4
  $region1: #{tpu_custom_call.1} parent=0
    #allocation3 [shape = 'u8[32768]{0}', space=vmem, size = 0x8000, scoped, tag = 'input window, operand 0']
    #allocation4 [shape = 's32[2]{0}', space=sflag, size = 0x8, scoped, tag = 'scoped memory for tpu_custom_call.1']
    #allocation5 [shape = 's32[2]{0}', space=sflag, size = 0x8, scoped, tag = 'scoped memory for tpu_custom_call.1']
    #allocation6 [shape = 'u8[1024]{0}', space=vmem, size = 0x400, scoped, tag = 'output window, operand 0']
    %12 = vsyncpa [#allocation4], 0
    %s13 = scalar_lea.sflag [#allocation4], 1
    %14 = vsyncpa %s13, 0
    %15 = vsyncpa [#allocation5], 0
    %s16 = scalar_lea.sflag [#allocation5], 1
    %17 = vsyncpa %s16, 0
    loop: start=0, step=1, limit=6
    $region2: #{tpu_custom_call.1} parent=1 // loop_pre_header
      _
    $region3: #{tpu_custom_call.1} parent=1 // loop_header
      %s19 = sphi 0, %s23
      %p20 = scmp.ge.s32.totalorder %s19, 6
      %s29 = sphi 0, %s31
      %s32 = sphi 0, %s29
      %s33 = sphi 0, %s32
      %s49 = sphi 0, %s33
      %s53 = sphi 0, %s53
      %s55 = sphi 0, %s53
      %s56 = sphi 0, %s55
      %s70 = sphi 0, %s56
      %s74 = sphi 0, %s74
      %s76 = sphi 0, %s74
      %s77 = sphi 0, %s76
      %s91 = sphi 0, %s77
      %s95 = sphi 0, %s95
      %s97 = sphi 0, %s95
      %s98 = sphi 0, %s97
      %s112 = sphi 0, %s98
      %s116 = sphi 0, %s116
      %s118 = sphi 0, %s116
      %s119 = sphi 0, %s118
      %s133 = sphi 0, %s119
      %s139 = sphi 0, %s141
      %s142 = sphi 0, %s139
      %s143 = sphi 0, %s142
      %s159 = sphi 0, %s143
      %s165 = sphi 0, %s167
      %s168 = sphi 0, %s165
      %s169 = sphi 0, %s168
      %s185 = sphi 0, %s169
    $region4: #{tpu_custom_call.1} parent=1 // loop_header_branch
      %22 = sbr.rel (%p20) target = $region8
    $region5: #{tpu_custom_call.1} parent=1 // loop_body
      %s24 = ssub.s32 %s19, 1
      %s25 = ssub.s32 %s19, 2
      %s26 = sadd.s32 %s19, 1
      %s27 = ssub.s32 %s19, %s26
      %p28 = scmp.eq.s32.totalorder %s27, 0
      %s30 = sadd.s32 %s29, 1
      %s31 = scalar_select %p28, %s29, %s30
      %p34 = pneg %p28
      %p35 = scmp.eq.s32.totalorder %s19, 3
      %p36 = por %p34, %p35
      %p37 = scmp.ne.s32.totalorder %s29, %s32
      %p38 = scmp.eq.s32.totalorder %s19, 0
      %p39 = por %p37, %p38
      %p40 = scmp.ne.s32.totalorder %s29, %s32
      %p41 = scmp.eq.s32.totalorder %s24, 3
      %p42 = por %p40, %p41
      %p43 = scmp.ne.s32.totalorder %s32, %s33
      %p44 = scmp.eq.s32.totalorder %s24, 0
      %p45 = por %p43, %p44
      %p46 = scmp.ne.s32.totalorder %s32, %s33
      %p47 = scmp.eq.s32.totalorder %s25, 3
      %p48 = por %p46, %p47
      %p50 = scmp.ne.s32.totalorder %s33, %s49
      %p51 = scmp.eq.s32.totalorder %s25, 0
      %p52 = por %p50, %p51
      %s54 = sadd.s32 %s53, 1
      %p57 = scmp.eq.s32.totalorder %s19, 3
      %p58 = scmp.ne.s32.totalorder %s53, %s55
      %p59 = scmp.eq.s32.totalorder %s19, 0
      %p60 = por %p58, %p59
      %p61 = scmp.ne.s32.totalorder %s53, %s55
      %p62 = scmp.eq.s32.totalorder %s24, 3
      %p63 = por %p61, %p62
      %p64 = scmp.ne.s32.totalorder %s55, %s56
      %p65 = scmp.eq.s32.totalorder %s24, 0
      %p66 = por %p64, %p65
      %p67 = scmp.ne.s32.totalorder %s55, %s56
      %p68 = scmp.eq.s32.totalorder %s25, 3
      %p69 = por %p67, %p68
      %p71 = scmp.ne.s32.totalorder %s56, %s70
      %p72 = scmp.eq.s32.totalorder %s25, 0
      %p73 = por %p71, %p72
      %s75 = sadd.s32 %s74, 1
      %p78 = scmp.eq.s32.totalorder %s19, 3
      %p79 = scmp.ne.s32.totalorder %s74, %s76
      %p80 = scmp.eq.s32.totalorder %s19, 0
      %p81 = por %p79, %p80
      %p82 = scmp.ne.s32.totalorder %s74, %s76
      %p83 = scmp.eq.s32.totalorder %s24, 3
      %p84 = por %p82, %p83
      %p85 = scmp.ne.s32.totalorder %s76, %s77
      %p86 = scmp.eq.s32.totalorder %s24, 0
      %p87 = por %p85, %p86
      %p88 = scmp.ne.s32.totalorder %s76, %s77
      %p89 = scmp.eq.s32.totalorder %s25, 3
      %p90 = por %p88, %p89
      %p92 = scmp.ne.s32.totalorder %s77, %s91
      %p93 = scmp.eq.s32.totalorder %s25, 0
      %p94 = por %p92, %p93
      %s96 = sadd.s32 %s95, 1
      %p99 = scmp.eq.s32.totalorder %s19, 3
      %p100 = scmp.ne.s32.totalorder %s95, %s97
      %p101 = scmp.eq.s32.totalorder %s19, 0
      %p102 = por %p100, %p101
      %p103 = scmp.ne.s32.totalorder %s95, %s97
      %p104 = scmp.eq.s32.totalorder %s24, 3
      %p105 = por %p103, %p104
      %p106 = scmp.ne.s32.totalorder %s97, %s98
      %p107 = scmp.eq.s32.totalorder %s24, 0
      %p108 = por %p106, %p107
      %p109 = scmp.ne.s32.totalorder %s97, %s98
      %p110 = scmp.eq.s32.totalorder %s25, 3
      %p111 = por %p109, %p110
      %p113 = scmp.ne.s32.totalorder %s98, %s112
      %p114 = scmp.eq.s32.totalorder %s25, 0
      %p115 = por %p113, %p114
      %s117 = sadd.s32 %s116, 1
      %p120 = scmp.eq.s32.totalorder %s19, 3
      %p121 = scmp.ne.s32.totalorder %s116, %s118
      %p122 = scmp.eq.s32.totalorder %s19, 0
      %p123 = por %p121, %p122
      %p124 = scmp.ne.s32.totalorder %s116, %s118
      %p125 = scmp.eq.s32.totalorder %s24, 3
      %p126 = por %p124, %p125
      %p127 = scmp.ne.s32.totalorder %s118, %s119
      %p128 = scmp.eq.s32.totalorder %s24, 0
      %p129 = por %p127, %p128
      %p130 = scmp.ne.s32.totalorder %s118, %s119
      %p131 = scmp.eq.s32.totalorder %s25, 3
      %p132 = por %p130, %p131
      %p134 = scmp.ne.s32.totalorder %s119, %s133
      %p135 = scmp.eq.s32.totalorder %s25, 0
      %p136 = por %p134, %p135
      %s137 = ssub.s32 %s19, %s26
      %p138 = scmp.eq.s32.totalorder %s137, 0
      %s140 = sadd.s32 %s139, 1
      %s141 = scalar_select %p138, %s139, %s140
      %p144 = pneg %p138
      %p145 = scmp.eq.s32.totalorder %s19, 3
      %p146 = por %p144, %p145
      %p147 = scmp.ne.s32.totalorder %s139, %s142
      %p148 = scmp.eq.s32.totalorder %s19, 0
      %p149 = por %p147, %p148
      %p150 = scmp.ne.s32.totalorder %s139, %s142
      %p151 = scmp.eq.s32.totalorder %s24, 3
      %p152 = por %p150, %p151
      %p153 = scmp.ne.s32.totalorder %s142, %s143
      %p154 = scmp.eq.s32.totalorder %s24, 0
      %p155 = por %p153, %p154
      %p156 = scmp.ne.s32.totalorder %s142, %s143
      %p157 = scmp.eq.s32.totalorder %s25, 3
      %p158 = por %p156, %p157
      %p160 = scmp.ne.s32.totalorder %s143, %s159
      %p161 = scmp.eq.s32.totalorder %s25, 0
      %p162 = por %p160, %p161
      %s163 = ssub.s32 %s19, %s26
      %p164 = scmp.eq.s32.totalorder %s163, 0
      %s166 = sadd.s32 %s165, 1
      %s167 = scalar_select %p164, %s165, %s166
      %p170 = pneg %p164
      %p171 = scmp.eq.s32.totalorder %s19, 3
      %p172 = por %p170, %p171
      %p173 = scmp.ne.s32.totalorder %s165, %s168
      %p174 = scmp.eq.s32.totalorder %s19, 0
      %p175 = por %p173, %p174
      %p176 = scmp.ne.s32.totalorder %s165, %s168
      %p177 = scmp.eq.s32.totalorder %s24, 3
      %p178 = por %p176, %p177
      %p179 = scmp.ne.s32.totalorder %s168, %s169
      %p180 = scmp.eq.s32.totalorder %s24, 0
      %p181 = por %p179, %p180
      %p182 = scmp.ne.s32.totalorder %s168, %s169
      %p183 = scmp.eq.s32.totalorder %s25, 3
      %p184 = por %p182, %p183
      %p186 = scmp.ne.s32.totalorder %s169, %s185
      %p187 = scmp.eq.s32.totalorder %s25, 0
      %p188 = por %p186, %p187
      %p189 = scmp.le.s32.totalorder 1, %s19
      %p190 = scmp.lt.s32.totalorder %s19, 5
      %p191 = pnand %p189, %p190
      %p192 = pneg %p191
      // Predicated region
      $region9: #{tpu_custom_call.1} parent=5 // pred_check
        _
      $region10: #{tpu_custom_call.1} parent=5 // pred_check_branch
        %194 = sbr.rel (%p191) target = $region12
      $region11: #{tpu_custom_call.1} parent=5 // pred_region
        %s195 = ssub.s32 %s19, 1
        // Predicated region
        $region13: #{tpu_custom_call.1} parent=11 // pred_check
          %p196 = pneg %p66
        $region14: #{tpu_custom_call.1} parent=11 // pred_check_branch
          %198 = sbr.rel (%p196) target = $region16
        $region15: #{tpu_custom_call.1} parent=11 // pred_region
          _
        $region16: #{tpu_custom_call.1} parent=11 // pred_fallthru
          _
        // Predicated region
        $region17: #{tpu_custom_call.1} parent=11 // pred_check
          %p199 = pneg %p87
        $region18: #{tpu_custom_call.1} parent=11 // pred_check_branch
          %201 = sbr.rel (%p199) target = $region20
        $region19: #{tpu_custom_call.1} parent=11 // pred_region
          _
        $region20: #{tpu_custom_call.1} parent=11 // pred_fallthru
          _
        // Predicated region
        $region21: #{tpu_custom_call.1} parent=11 // pred_check
          %p202 = pneg %p108
        $region22: #{tpu_custom_call.1} parent=11 // pred_check_branch
          %204 = sbr.rel (%p202) target = $region24
        $region23: #{tpu_custom_call.1} parent=11 // pred_region
          _
        $region24: #{tpu_custom_call.1} parent=11 // pred_fallthru
          _
        // Predicated region
        $region25: #{tpu_custom_call.1} parent=11 // pred_check
          %p205 = pneg %p129
        $region26: #{tpu_custom_call.1} parent=11 // pred_check_branch
          %207 = sbr.rel (%p205) target = $region28
        $region27: #{tpu_custom_call.1} parent=11 // pred_region
          _
        $region28: #{tpu_custom_call.1} parent=11 // pred_fallthru
          _
      $region12: #{tpu_custom_call.1} parent=5 // pred_fallthru
        _
      %p208 = scmp.lt.s32.totalorder %s19, 4
      // Predicated region
      $region29: #{tpu_custom_call.1} parent=5 // pred_check
        %p209 = pneg %p208
      $region30: #{tpu_custom_call.1} parent=5 // pred_check_branch
        %211 = sbr.rel (%p209) target = $region32
      $region31: #{tpu_custom_call.1} parent=5 // pred_region
        // Predicated region
        $region33: #{tpu_custom_call.1} parent=31 // pred_check
          %p212 = pneg %p39
        $region34: #{tpu_custom_call.1} parent=31 // pred_check_branch
          %214 = sbr.rel (%p212) target = $region36
        $region35: #{tpu_custom_call.1} parent=31 // pred_region
          %s215 = sand.u32 %s29, 1
          %s216 = scalar_lea.sflag [#allocation4], %s215
          %s217 = sand.u32 %s29, 1
          %s218 = smul.addr %s217, 32
          %s219 = scalar_lea.vmem [#allocation3], %s218
          %s221 = ssub.s32 512, 512
          %222 = vsyncadd %s216, %s221
          %s223 = smul.addr %s19, 128
          %s224 = scalar_lea.hbm %s0, %s223
          %s225 = sshll.u32 %s219, 4
          %s226 = int_to_ptr.vmem [resolvable:$true] %s225
          %231 = dma.hbm_to_vmem [thread:$0]  %s224, 512, %s226, %s216, 512, 128, 8
        $region36: #{tpu_custom_call.1} parent=31 // pred_fallthru
          _
        // Predicated region
        $region37: #{tpu_custom_call.1} parent=31 // pred_check
          %p232 = pneg %p149
        $region38: #{tpu_custom_call.1} parent=31 // pred_check_branch
          %234 = sbr.rel (%p232) target = $region40
        $region39: #{tpu_custom_call.1} parent=31 // pred_region
          %p235 = scmp.lt.s32.totalorder %s19, 3
          %s236 = scalar_select %p235, %s19, 3
          %s237 = scalar_lea.vmem %s5, %s236
        $region40: #{tpu_custom_call.1} parent=31 // pred_fallthru
          _
      $region32: #{tpu_custom_call.1} parent=5 // pred_fallthru
        _
      %p238 = scmp.le.s32.totalorder 1, %s19
      %p239 = scmp.lt.s32.totalorder %s19, 5
      %p240 = pnand %p238, %p239
      %p241 = pneg %p240
      // Predicated region
      $region41: #{tpu_custom_call.1} parent=5 // pred_check
        _
      $region42: #{tpu_custom_call.1} parent=5 // pred_check_branch
        %243 = sbr.rel (%p240) target = $region44
      $region43: #{tpu_custom_call.1} parent=5 // pred_region
        %s244 = ssub.s32 %s19, 1
        %s245 = sand.u32 %s32, 1
        %s246 = scalar_lea.sflag [#allocation4], %s245
        %s247 = sand.u32 %s32, 1
        %s248 = smul.addr %s247, 32
        %s249 = scalar_lea.vmem [#allocation3], %s248
        // Predicated region
        $region45: #{tpu_custom_call.1} parent=43 // pred_check
          %p250 = pneg %p45
        $region46: #{tpu_custom_call.1} parent=43 // pred_check_branch
          %252 = sbr.rel (%p250) target = $region48
        $region47: #{tpu_custom_call.1} parent=43 // pred_region
          %253 = dma.done %s246, 512
        $region48: #{tpu_custom_call.1} parent=43 // pred_fallthru
          _
        %s254 = sand.u32 %s32, 1
        %s255 = scalar_lea.sflag [#allocation4], %s254
        %s256 = sand.u32 %s32, 1
        %s257 = smul.addr %s256, 32
        %s258 = scalar_lea.vmem [#allocation3], %s257
        %p259 = pneg %p45
        %p260 = pneg %p42
        %p261 = pneg %p66
        %p262 = pneg %p63
        %p263 = pneg %p87
        %p264 = pneg %p84
        %p265 = pneg %p108
        %p266 = pneg %p105
        %p267 = pneg %p129
        %p268 = pneg %p126
        %p269 = scmp.lt.s32.totalorder %s24, 3
        %s270 = scalar_select %p269, %s24, 3
        %s271 = scalar_lea.vmem %s5, %s270
        %p272 = pneg %p155
        %p273 = pneg %p152
        %p274 = pneg %p181
        %p275 = pneg %p178
        %s276 = sand.u32 %s168, 1
        %s277 = scalar_lea.sflag [#allocation5], %s276
        %s278 = sand.u32 %s168, 1
        %s279 = scalar_lea.vmem [#allocation6], %s278
        %p280 = scmp.lt.s32.totalorder %s24, 3
        %s281 = scalar_select %p280, %s24, 3
        %s282 = scalar_lea.vmem %s5, %s281
        %v283 = vld [vmem:[%s1] sm:$0xff]
        %v284 = vld [vmem:[%s1 + $0x8] sm:$0xff]
        %v285 = vld [vmem:[%s1 + $0x10] sm:$0xff]
        %v286 = vld [vmem:[%s1 + $0x18] sm:$0xff]
        %v287 = vld [vmem:[%s249] sm:$0xff]
        %v288 = vld [vmem:[%s249 + $0x8] sm:$0xff]
        %v289 = vld [vmem:[%s249 + $0x10] sm:$0xff]
        %v290 = vld [vmem:[%s249 + $0x18] sm:$0xff]
        %v291 = vld [vmem:[%s2] sm:$0xff]
        %v292 = vld [vmem:[%s2 + $0x8] sm:$0xff]
        %v293 = vld [vmem:[%s2 + $0x10] sm:$0xff]
        %v294 = vld [vmem:[%s2 + $0x18] sm:$0xff]
        %296 = vset.pattern.permute.xlu0 0
        %297 = vperm.xlu0 %296, %v291
        %v298 = vpop.permute.xlu0 %297
        %301 = vset.pattern.permute.xlu0 0
        %302 = vperm.xlu0 %301, %v292
        %v303 = vpop.permute.xlu0 %302
        %306 = vset.pattern.permute.xlu0 0
        %307 = vperm.xlu0 %306, %v293
        %v308 = vpop.permute.xlu0 %307
        %311 = vset.pattern.permute.xlu0 0
        %312 = vperm.xlu0 %311, %v294
        %v313 = vpop.permute.xlu0 %312
        %vm315 = vcmask 261120
        %v317 = vsel %vm315, %v283, 0
        %v320 = vsel %vm315, %v284, 0
        %v323 = vsel %vm315, %v285, 0
        %v326 = vsel %vm315, %v286, 0
        %328 = vmatprep.subr.mxu0 0.0
        %329 = vmatpush1.msra.mxu0 %v287
        %330 = vmatprep.subr.mxu0 0.0
        %331 = vmatpush1.msra.mxu0 %v288
        %332 = vmatprep.subr.mxu0 0.0
        %333 = vmatpush1.msra.mxu0 %v289
        %334 = vmatprep.subr.mxu0 0.0
        %335 = vmatpush1.msra.mxu0 %v290
        %336 = vmatprep.subr.mxu0 0.0
        %337 = vmatpush1.msra.mxu0 0.0
        %338 = vmatprep.subr.mxu0 0.0
        %339 = vmatpush1.msra.mxu0 0.0
        %340 = vmatprep.subr.mxu0 0.0
        %341 = vmatpush1.msra.mxu0 0.0
        %342 = vmatprep.subr.mxu0 0.0
        %343 = vmatpush1.msra.mxu0 0.0
        %344 = vmatprep.subr.mxu0 0.0
        %345 = vmatpush1.msra.mxu0 0.0
        %346 = vmatprep.subr.mxu0 0.0
        %347 = vmatpush1.msra.mxu0 0.0
        %348 = vmatprep.subr.mxu0 0.0
        %349 = vmatpush1.msra.mxu0 0.0
        %350 = vmatprep.subr.mxu0 0.0
        %351 = vmatpush1.msra.mxu0 0.0
        %352 = vmatprep.subr.mxu0 0.0
        %353 = vmatpush1.msra.mxu0 0.0
        %354 = vmatprep.subr.mxu0 0.0
        %355 = vmatpush1.msra.mxu0 0.0
        %356 = vmatprep.subr.mxu0 0.0
        %357 = vmatpush1.msra.mxu0 0.0
        %358 = vmatprep.subr.mxu0 0.0
        %359 = vmatpush1.msra.mxu0 0.0
        %360 = vmatprep.subr.mxu0 0.0
        %361 = vmatpush1.msra.mxu0 0.0
        %362 = vmatprep.subr.mxu0 0.0
        %363 = vmatpush1.msra.mxu0 0.0
        %364 = vmatprep.subr.mxu0 0.0
        %365 = vmatpush1.msra.mxu0 0.0
        %366 = vmatprep.subr.mxu0 0.0
        %367 = vmatpush1.msra.mxu0 0.0
        %368 = vmatprep.subr.mxu0 0.0
        %369 = vmatpush1.msra.mxu0 0.0
        %370 = vmatprep.subr.mxu0 0.0
        %371 = vmatpush1.msra.mxu0 0.0
        %372 = vmatprep.subr.mxu0 0.0
        %373 = vmatpush1.msra.mxu0 0.0
        %374 = vmatprep.subr.mxu0 0.0
        %375 = vmatpush1.msra.mxu0 0.0
        %376 = vmatprep.subr.mxu0 0.0
        %377 = vmatpush1.msra.mxu0 0.0
        %378 = vmatprep.subr.mxu0 0.0
        %379 = vmatpush1.msra.mxu0 0.0
        %380 = vmatprep.subr.mxu0 0.0
        %381 = vmatpush1.msra.mxu0 0.0
        %382 = vmatprep.subr.mxu0 0.0
        %383 = vmatpush1.msra.mxu0 0.0
        %384 = vmatprep.subr.mxu0 0.0
        %385 = vmatpush1.msra.mxu0 0.0
        %386 = vmatprep.subr.mxu0 0.0
        %387 = vmatpush1.msra.mxu0 0.0
        %388 = vmatprep.subr.mxu0 0.0
        %389 = vmatpush1.msra.mxu0 0.0
        %390 = vmatprep.subr.mxu0 0.0
        %391 = vmatpush1.msra.mxu0 0.0
        %392 = vmatprep.mubr.f32.mxu0 0.0
        %393 = vmatmul.mubr.f32.gmra.mrb[0].mxu0 %v317
        %v394 = vpop.f32.mrb[0].mxu0
        %v395 = vadd.f32 %v298, %v394
        %v396 = vpop.f32.mrb[0].mxu0
        %397 = vmatprep.mubr.f32.mxu0 0.0
        %398 = vmatmul.mubr.f32.gmra.mrb[0].mxu0 %v320
        %v399 = vpop.f32.mrb[0].mxu0
        %v400 = vadd.f32 %v303, %v399
        %v401 = vpop.f32.mrb[0].mxu0
        %402 = vmatprep.mubr.f32.mxu0 0.0
        %403 = vmatmul.mubr.f32.gmra.mrb[0].mxu0 %v323
        %v404 = vpop.f32.mrb[0].mxu0
        %v405 = vadd.f32 %v308, %v404
        %v406 = vpop.f32.mrb[0].mxu0
        %407 = vmatprep.mubr.f32.mxu0 0.0
        %408 = vmatmul.mubr.f32.gmra.mrb[0].mxu0 %v326
        %v409 = vpop.f32.mrb[0].mxu0
        %v410 = vadd.f32 %v313, %v409
        %v411 = vpop.f32.mrb[0].mxu0
        %412 = vdwg.mxu0
        %v413 = vmax.f32 %v395, 0.0
        %v414 = vmax.f32 %v400, 0.0
        %v415 = vmax.f32 %v405, 0.0
        %v416 = vmax.f32 %v410, 0.0
        %v417 = vld [vmem:[%s3] sm:$0xff]
        %v418 = vld [vmem:[%s3 + $0x8] sm:$0xff]
        %v419 = vld [vmem:[%s3 + $0x10] sm:$0xff]
        %v420 = vld [vmem:[%s3 + $0x18] sm:$0xff]
        %422 = vset.pattern.permute.xlu0 0
        %423 = vperm.xlu0 %422, %v417
        %v424 = vpop.permute.xlu0 %423
        %427 = vset.pattern.permute.xlu0 0
        %428 = vperm.xlu0 %427, %v418
        %v429 = vpop.permute.xlu0 %428
        %432 = vset.pattern.permute.xlu0 0
        %433 = vperm.xlu0 %432, %v419
        %v434 = vpop.permute.xlu0 %433
        %437 = vset.pattern.permute.xlu0 0
        %438 = vperm.xlu0 %437, %v420
        %v439 = vpop.permute.xlu0 %438
        %v441 = vmul.f32 %v413, %v424
        %v442 = vmul.f32 %v414, %v429
        %v443 = vmul.f32 %v415, %v434
        %v444 = vmul.f32 %v416, %v439
        %v445 = vadd.f32 %v441, %v442
        %v446 = vadd.f32 %v445, %v443
        %v447 = vadd.f32 %v446, %v444
        %v448 = vrot.slane %v447, 4
        %v449 = vadd.f32 %v447, %v448
        %v450 = vrot.slane %v449, 2
        %v451 = vadd.f32 %v449, %v450
        %v452 = vrot.slane %v451, 1
        %v453 = vadd.f32 %v451, %v452
        %s454 = sld [smem:[#allocation2]]
        %v455 = vstv %s454
        %v456 = vadd.f32 %v453, %v455
        %v457 = vld [vmem:[%s282] sm:$0x1]
        %v458 = vadd.f32 %v456, %v457
        %v459 = vmax.f32 %v458, -1.5
        %v460 = vmin.f32 %v459, 10.0
        %v461 = vxor.u32 %v460, 2147483648
        %v462 = vmul.f32 %v461, 1.442695
        %v463 = vpow.pop %v462
        %v464 = vadd.f32 %v463, 1.0
        %v465 = vrcp.pop %v464
        %v466 = vmul.f32 1.0, %v465
        %467 = vst [vmem:[%s279] sm:$0x1] %v466
        %s468 = sand.u32 %s168, 1
        %s469 = scalar_lea.sflag [#allocation5], %s468
        %s470 = sand.u32 %s168, 1
        %s471 = scalar_lea.vmem [#allocation6], %s470
        // Predicated region
        $region49: #{tpu_custom_call.1} parent=43 // pred_check
          %p472 = pneg %p178
        $region50: #{tpu_custom_call.1} parent=43 // pred_check_branch
          %474 = sbr.rel (%p472) target = $region52
        $region51: #{tpu_custom_call.1} parent=43 // pred_region
          %s476 = ssub.s32 16, 16
          %477 = vsyncadd %s469, %s476
          %s478 = smul.addr %s24, 16
          %s479 = scalar_lea.hbm %s6, %s478
          %s481 = sshll.u32 %s471, 4
          %s482 = int_to_ptr.vmem [resolvable:$true] %s481
          %484 = dma.vmem_to_hbm [thread:$0]  %s482, 16, %s479, %s469
        $region52: #{tpu_custom_call.1} parent=43 // pred_fallthru
          _
      $region44: #{tpu_custom_call.1} parent=5 // pred_fallthru
        _
      %p485 = scmp.le.s32.totalorder 2, %s19
      // Predicated region
      $region53: #{tpu_custom_call.1} parent=5 // pred_check
        %p486 = pneg %p485
      $region54: #{tpu_custom_call.1} parent=5 // pred_check_branch
        %488 = sbr.rel (%p486) target = $region56
      $region55: #{tpu_custom_call.1} parent=5 // pred_region
        %s489 = ssub.s32 %s19, 2
        // Predicated region
        $region57: #{tpu_custom_call.1} parent=55 // pred_check
          %p490 = pneg %p184
        $region58: #{tpu_custom_call.1} parent=55 // pred_check_branch
          %492 = sbr.rel (%p490) target = $region60
        $region59: #{tpu_custom_call.1} parent=55 // pred_region
          %s493 = sand.u32 %s169, 1
          %s494 = scalar_lea.sflag [#allocation5], %s493
          %s495 = sand.u32 %s169, 1
          %s496 = scalar_lea.vmem [#allocation6], %s495
          %497 = dma.done %s494, 16
        $region60: #{tpu_custom_call.1} parent=55 // pred_fallthru
          _
      $region56: #{tpu_custom_call.1} parent=5 // pred_fallthru
        _
    $region6: #{tpu_custom_call.1} parent=1 // loop_footer
      %s23 = sadd.s32 1, %s19
    $region7: #{tpu_custom_call.1} parent=1 // loop_footer_branch
      %18 = sbr.rel target = $region3
    $region8: #{tpu_custom_call.1} parent=1 // loop_exit
      _
    %498 = vsyncpa [#allocation4], 1
    %s499 = scalar_lea.sflag [#allocation4], 1
    %500 = vsyncpa %s499, 1
    %501 = vsyncpa [#allocation5], 1
    %s502 = scalar_lea.sflag [#allocation5], 1
    %503 = vsyncpa %s502, 1

</llo_original>
